<compile_context>
chip_gen: v5e
topology: v5e:2x2
jax: 0.10.0
libtpu: 0.0.40
codegen_flags: <defaults>
</compile_context>

<pallas_src>
import math

import numpy as np

import jax
import jax.numpy as jnp
from jax.experimental import pallas as pl
from jax.experimental.pallas import tpu as pltpu


# ----------------------------- Pallas kernels ------------------------------


def _stats_kernel(x_ref, sum_ref, sumsq_ref):
    """Accumulate lane-dense per-channel sum / sum-of-squares partials.

    x_ref:            [b_blk, c_blk, s_blk, 128]
    sum_ref/sumsq_ref: [1, c_blk, 128]  (resident accumulator across batch/spatial)
    """
    x = x_ref[...].astype(jnp.float32)
    ps = jnp.sum(x, axis=(0, 2))                  # [c_blk, 128]  (VPU adds)
    pq = jnp.sum(x * x, axis=(0, 2))              # [c_blk, 128]

    @pl.when(jnp.logical_and(pl.program_id(1) == 0, pl.program_id(2) == 0))
    def _():                                      # first reduction step: init acc
        sum_ref[...] = jnp.zeros_like(sum_ref)
        sumsq_ref[...] = jnp.zeros_like(sumsq_ref)

    sum_ref[...] += ps[None]
    sumsq_ref[...] += pq[None]


def _normalize_kernel(x_ref, scale_ref, shift_ref, o_ref):
    """y = x * scale_c + shift_c (per-channel, lane-dense scale/shift, one FMA)."""
    x = x_ref[...].astype(jnp.float32)            # [b_blk, c_blk, s_blk, 128]
    scale = scale_ref[...][:, :, None, :]         # [1, c_blk, 1, 128]
    shift = shift_ref[...][:, :, None, :]
    o_ref[...] = (x * scale + shift).astype(o_ref.dtype)


# ----------------------------- tiling helpers ------------------------------


def _divisors(n):
    return [d for d in range(1, n + 1) if n % d == 0]


def _vmem_plan():
    """(block byte budget, vmem_limit_bytes), derived from the VMEM generation."""
    vmem_cap = 64 * 1024 * 1024                   # conservative (v7x-safe) default
    try:
        vmem_cap = int(getattr(pltpu.get_tpu_info(), "vmem_capacity_bytes",
                               vmem_cap))
    except Exception:
        pass
    if vmem_cap <= 64 * 1024 * 1024:              # v7x-class: 64 MiB VMEM
        return 8 * 1024 * 1024, 48 * 1024 * 1024
    return 16 * 1024 * 1024, 96 * 1024 * 1024     # v5e/v6e: 128 MiB VMEM


def _plan_blocks(B, C, n_sub, itemsize, budget_bytes):
    """Pick (b_blk, c_blk, s_blk) for the [B, C, n_sub, 128] view.

    c_blk / b_blk are plain outer block dims (any divisor is legal); s_blk must be
    a multiple of 8 or the full n_sub.  Blocks are grown to fill `budget_bytes`.
    """
    lane_bytes = 128 * itemsize
    s_opts = sorted({d for d in _divisors(n_sub) if d % 8 == 0} | {n_sub})
    s_min = s_opts[0]
    # Channel block: prefer >=2 channel programs so the stats pass (whose only
    # "parallel" grid axis is the channel axis) uses both v7x TensorCores.
    c_opts = [d for d in _divisors(C) if d <= C // 2] or [C]
    c_blk = next((d for d in reversed(c_opts)
                  if d * s_min * lane_bytes <= budget_bytes), c_opts[0])
    # Batch block: largest divisor of B keeping the minimal block within budget.
    b_blk = next((d for d in reversed(_divisors(B))
                  if d * c_blk * s_min * lane_bytes <= budget_bytes), 1)
    # Spatial block: fill what is left of the budget.
    s_blk = next((d for d in reversed(s_opts)
                  if b_blk * c_blk * d * lane_bytes <= budget_bytes), s_min)
    return b_blk, c_blk, s_blk


# --------------------------- pallas_call wrappers ---------------------------


def _channel_stats(x4, b_blk, c_blk, s_blk, vmem_limit):
    B, C, n_sub, _ = x4.shape
    ncb = C // c_blk
    grid = (ncb, B // b_blk, n_sub // s_blk)      # channel parallel, reductions last
    return pl.pallas_call(
        _stats_kernel,
        grid=grid,
        in_specs=[pl.BlockSpec((b_blk, c_blk, s_blk, 128),
                               lambda ci, bi, si: (bi, ci, si, 0))],
        out_specs=(pl.BlockSpec((1, c_blk, 128), lambda ci, bi, si: (ci, 0, 0)),
                   pl.BlockSpec((1, c_blk, 128), lambda ci, bi, si: (ci, 0, 0))),
        out_shape=(jax.ShapeDtypeStruct((ncb, c_blk, 128), jnp.float32),
                   jax.ShapeDtypeStruct((ncb, c_blk, 128), jnp.float32)),
        compiler_params=pltpu.CompilerParams(
            dimension_semantics=("parallel", "arbitrary", "arbitrary"),
            vmem_limit_bytes=vmem_limit),
    )(x4)


def _normalize(x4, scale4, shift4, b_blk, c_blk, s_blk, vmem_limit):
    B, C, n_sub, _ = x4.shape
    ncb = C // c_blk
    grid = (B // b_blk, ncb, n_sub // s_blk)
    return pl.pallas_call(
        _normalize_kernel,
        grid=grid,
        in_specs=[pl.BlockSpec((b_blk, c_blk, s_blk, 128),
                               lambda bi, ci, si: (bi, ci, si, 0)),
                  pl.BlockSpec((1, c_blk, 128), lambda bi, ci, si: (ci, 0, 0)),
                  pl.BlockSpec((1, c_blk, 128), lambda bi, ci, si: (ci, 0, 0))],
        out_specs=pl.BlockSpec((b_blk, c_blk, s_blk, 128),
                               lambda bi, ci, si: (bi, ci, si, 0)),
        out_shape=jax.ShapeDtypeStruct(x4.shape, x4.dtype),
        compiler_params=pltpu.CompilerParams(
            dimension_semantics=("parallel", "parallel", "parallel"),
            vmem_limit_bytes=vmem_limit),
    )(x4, scale4, shift4)


# ------------------------------ forward glue --------------------------------


def _field_metadata(Rs):
    """Static (trace-time) per-channel / per-feature bookkeeping for Rs."""
    feat_of_channel = []
    feat_is_scalar = []
    for m, d in Rs:
        f0 = len(feat_is_scalar)
        for j in range(m):
            feat_of_channel.extend([f0 + j] * d)
            feat_is_scalar.append(d == 1)
    feat_of_channel = np.asarray(feat_of_channel, np.int32)
    feat_is_scalar = np.asarray(feat_is_scalar, bool)
    scalar_feat_idx = np.nonzero(feat_is_scalar)[0].astype(np.int32)
    return feat_of_channel, feat_is_scalar, scalar_feat_idx


def so3_batchnorm_forward(x, Rs, weight, bias, running_mean, running_var,
                          eps=1e-5, momentum=0.1):
    """Training-mode forward of SO3_BatchNorm (reduce='mean', affine=True).

    Returns (output, new_running_mean, new_running_var); PyTorch's in-place
    running-buffer update is done functionally.
    """
    B = x.shape[0]
    C = x.shape[1]
    spatial = x.shape[2:]
    S = int(math.prod(spatial))
    assert C == sum(m * d for m, d in Rs)

    feat_of_channel, feat_is_scalar, scalar_feat_idx = _field_metadata(Rs)
    F = int(feat_is_scalar.shape[0])
    assert weight.shape[0] == F and running_var.shape[0] == F

    # ---- lane-dense 4-D view (pad ragged spatial sizes with stats-neutral 0s) ----
    x3 = x.reshape(B, C, S)
    S_pad = ((S + 127) // 128) * 128
    if S_pad != S:
        x3 = jnp.pad(x3, ((0, 0), (0, 0), (0, S_pad - S)))
    n_sub = S_pad // 128
    x4 = x3.reshape(B, C, n_sub, 128)

    block_budget, vmem_limit = _vmem_plan()
    b_blk, c_blk, s_blk = _plan_blocks(B, C, n_sub, x.dtype.itemsize, block_budget)
    ncb = C // c_blk

    # ---- pass 1: per-channel first/second moments over (batch, spatial) ----
    sum_l, sumsq_l = _channel_stats(x4, b_blk, c_blk, s_blk, vmem_limit)
    ch_sum = jnp.sum(sum_l.reshape(C, 128), axis=1)       # final lane fold, O(C)
    ch_sumsq = jnp.sum(sumsq_l.reshape(C, 128), axis=1)

    # ---- tiny per-feature bookkeeping (O(C) plain-JAX ops) ----
    inv_bs = 1.0 / float(B * S)                            # true B*S (pad-neutral)
    seg = jnp.asarray(feat_of_channel)
    ex2_f = jax.ops.segment_sum(ch_sumsq, seg, num_segments=F,
                                indices_are_sorted=True) * inv_bs
    mean_all_f = jax.ops.segment_sum(ch_sum, seg, num_segments=F,
                                     indices_are_sorted=True) * inv_bs
    is_scalar = jnp.asarray(feat_is_scalar)
    mean_f = jnp.where(is_scalar, mean_all_f, 0.0)         # mean only for l=0 fields
    var_f = ex2_f - mean_f * mean_f                        # one-pass E[x^2] - mean^2

    scale_f = weight.astype(jnp.float32) * jax.lax.rsqrt(var_f + eps)
    bias_f = jnp.zeros((F,), jnp.float32)
    if scalar_feat_idx.size:
        bias_f = bias_f.at[jnp.asarray(scalar_feat_idx)].set(
            bias.astype(jnp.float32))
    shift_f = bias_f - mean_f * scale_f                    # fold mean + bias

    chan_scale = jnp.take(scale_f, seg)                    # (C,)
    chan_shift = jnp.take(shift_f, seg)
    scale4 = jnp.broadcast_to(chan_scale.reshape(ncb, c_blk, 1), (ncb, c_blk, 128))
    shift4 = jnp.broadcast_to(chan_shift.reshape(ncb, c_blk, 1), (ncb, c_blk, 128))

    # ---- pass 2: single FMA sweep over the whole tensor ----
    out = _normalize(x4, scale4, shift4, b_blk, c_blk, s_blk, vmem_limit)
    out = out.reshape(B, C, S_pad)
    if S_pad != S:
        out = out[:, :, :S]
    out = out.reshape(x.shape)

    # ---- running-statistics EMA (tiny vectors, functional update) ----
    new_rv = (1.0 - momentum) * running_var + momentum * var_f
    if scalar_feat_idx.size:
        new_rm = ((1.0 - momentum) * running_mean
                  + momentum * jnp.take(mean_all_f, jnp.asarray(scalar_feat_idx)))
    else:
        new_rm = running_mean
    return out, new_rm, new_rv


# ---------------------------- pure-JAX reference ----------------------------


def _reference(x, Rs, weight, bias, running_mean, running_var,
               eps=1e-5, momentum=0.1):
    B = x.shape[0]
    spatial = x.shape[2:]
    S = int(math.prod(spatial))
    fields, new_means, new_vars = [], [], []
    ix = irm = irv = iw = ib = 0
    for m, d in Rs:
        field = x[:, ix:ix + m * d].reshape(B, m, d, S)
        ix += m * d
        if d == 1:
            fm = field.mean(axis=0).mean(axis=-1).reshape(-1)
            new_means.append((1.0 - momentum) * running_mean[irm:irm + m]
                             + momentum * fm)
            irm += m
            field = field - fm.reshape(1, m, 1, 1)
        fn = jnp.sum(field ** 2, axis=2).mean(axis=-1).mean(axis=0)
        new_vars.append((1.0 - momentum) * running_var[irv:irv + m]
                        + momentum * fn)
        irv += m
        fn = (fn + eps) ** -0.5
        w = weight[iw:iw + m]
        iw += m
        fn = fn * w
        field = field * fn.reshape(1, m, 1, 1)
        if d == 1:
            b = bias[ib:ib + m]
            ib += m
            field = field + b.reshape(1, m, 1, 1)
        fields.append(field.reshape(B, m * d, *spatial))
    return (jnp.concatenate(fields, axis=1),
            jnp.concatenate(new_means) if new_means else running_mean,
            jnp.concatenate(new_vars))


# ---------------------------------- main -------------------------------------


if __name__ == "__main__":
    # Rs = [(multiplicity, irrep dim 2l+1)]: 4 scalars (l=0), 2 x l=1, 2 x l=2
    Rs = [(4, 1), (2, 3), (2, 5)]
    B, X, Y, Z = 2, 16, 16, 16                    # S = 4096 -> exercises spatial grid
    C = sum(m * d for m, d in Rs)                 # 20 stacked channels
    num_features = sum(m for m, _ in Rs)          # 8
    num_scalar = sum(m for m, d in Rs if d == 1)  # 4

    key = jax.random.PRNGKey(0)
    k1, k2, k3 = jax.random.split(key, 3)
    x = jax.random.normal(k1, (B, C, X, Y, Z), dtype=jnp.float32)
    weight = 1.0 + 0.1 * jax.random.normal(k2, (num_features,), dtype=jnp.float32)
    bias = 0.1 * jax.random.normal(k3, (num_scalar,), dtype=jnp.float32)
    running_mean = jnp.zeros((num_scalar,), jnp.float32)
    running_var = jnp.ones((num_features,), jnp.float32)

    out, new_rm, new_rv = so3_batchnorm_forward(
        x, Rs, weight, bias, running_mean, running_var)
    jax.block_until_ready((out, new_rm, new_rv))

    ref_out, ref_rm, ref_rv = _reference(
        x, Rs, weight, bias, running_mean, running_var)
    assert out.shape == x.shape
    assert jnp.allclose(out, ref_out, atol=2e-5, rtol=2e-5)
    assert jnp.allclose(new_rm, ref_rm, atol=2e-5, rtol=2e-5)
    assert jnp.allclose(new_rv, ref_rv, atol=2e-5, rtol=2e-5)

    print("KERNEL_OK")
</pallas_src>

<mosaic_0001>
module attributes {stable_mosaic.version = 11 : i64} {
  func.func @_stats_kernel(%arg0: i32, %arg1: i32, %arg2: i32, %arg3: memref<2x10x32x128xf32, #tpu.memory_space<vmem>>, %arg4: memref<1x10x128xf32, #tpu.memory_space<vmem>>, %arg5: memref<1x10x128xf32, #tpu.memory_space<vmem>>) attributes {dimension_semantics = [#tpu.dimension_semantics<parallel>, #tpu.dimension_semantics<arbitrary>, #tpu.dimension_semantics<arbitrary>], iteration_bounds = array<i64: 2, 1, 1>, scalar_prefetch = 0 : i64, scratch_operands = 0 : i64, tpu.core_type = #tpu.core_type<tc>, window_params = [{transform_indices = @transform_0, window_bounds = array<i64: 2, 10, 32, 128>}, {transform_indices = @transform_1, window_bounds = array<i64: 1, 10, 128>}, {transform_indices = @transform_2, window_bounds = array<i64: 1, 10, 128>}]} {
    %c0 = arith.constant 0 : index
    %c0_0 = arith.constant 0 : index
    %c0_1 = arith.constant 0 : index
    %c0_2 = arith.constant 0 : index
    %0 = vector.load %arg3[%c0, %c0_0, %c0_1, %c0_2] : memref<2x10x32x128xf32, #tpu.memory_space<vmem>>, vector<2x10x32x128xf32>
    %cst = arith.constant dense<0.000000e+00> : vector<10x128xf32>
    %1 = vector.multi_reduction <add>, %0, %cst [0, 2] : vector<2x10x32x128xf32> to vector<10x128xf32>
    %2 = arith.mulf %0, %0 : vector<2x10x32x128xf32>
    %cst_3 = arith.constant dense<0.000000e+00> : vector<10x128xf32>
    %3 = vector.multi_reduction <add>, %2, %cst_3 [0, 2] : vector<2x10x32x128xf32> to vector<10x128xf32>
    %c0_i32 = arith.constant 0 : i32
    %4 = arith.cmpi eq, %arg1, %c0_i32 : i32
    %c0_i32_4 = arith.constant 0 : i32
    %5 = arith.cmpi eq, %arg2, %c0_i32_4 : i32
    %6 = arith.andi %4, %5 : i1
    %7 = arith.extui %6 : i1 to i32
    %c0_i32_5 = arith.constant 0 : i32
    %8 = arith.cmpi ne, %7, %c0_i32_5 : i32
    scf.if %8 {
      %cst_18 = arith.constant 0.000000e+00 : f32
      %17 = vector.broadcast %cst_18 : f32 to vector<1x10x128xf32>
      %c0_19 = arith.constant 0 : index
      %c0_20 = arith.constant 0 : index
      %c0_21 = arith.constant 0 : index
      %18 = vector.load %arg4[%c0_19, %c0_20, %c0_21] : memref<1x10x128xf32, #tpu.memory_space<vmem>>, vector<1x10x128xf32>
      tpu.vector_store %arg4[%c0_19, %c0_20, %c0_21], %17 {strides = array<i32>} : memref<1x10x128xf32, #tpu.memory_space<vmem>>, vector<1x10x128xf32>,
      %cst_22 = arith.constant 0.000000e+00 : f32
      %19 = vector.broadcast %cst_22 : f32 to vector<1x10x128xf32>
      %c0_23 = arith.constant 0 : index
      %c0_24 = arith.constant 0 : index
      %c0_25 = arith.constant 0 : index
      %20 = vector.load %arg5[%c0_23, %c0_24, %c0_25] : memref<1x10x128xf32, #tpu.memory_space<vmem>>, vector<1x10x128xf32>
      tpu.vector_store %arg5[%c0_23, %c0_24, %c0_25], %19 {strides = array<i32>} : memref<1x10x128xf32, #tpu.memory_space<vmem>>, vector<1x10x128xf32>,
    } else {
    }
    %c0_6 = arith.constant 0 : index
    %c0_7 = arith.constant 0 : index
    %c0_8 = arith.constant 0 : index
    %9 = vector.load %arg4[%c0_6, %c0_7, %c0_8] : memref<1x10x128xf32, #tpu.memory_space<vmem>>, vector<1x10x128xf32>
    %10 = vector.shape_cast %1 : vector<10x128xf32> to vector<1x10x128xf32>
    %11 = arith.addf %9, %10 : vector<1x10x128xf32>
    %c0_9 = arith.constant 0 : index
    %c0_10 = arith.constant 0 : index
    %c0_11 = arith.constant 0 : index
    %12 = vector.load %arg4[%c0_9, %c0_10, %c0_11] : memref<1x10x128xf32, #tpu.memory_space<vmem>>, vector<1x10x128xf32>
    tpu.vector_store %arg4[%c0_9, %c0_10, %c0_11], %11 {strides = array<i32>} : memref<1x10x128xf32, #tpu.memory_space<vmem>>, vector<1x10x128xf32>,
    %c0_12 = arith.constant 0 : index
    %c0_13 = arith.constant 0 : index
    %c0_14 = arith.constant 0 : index
    %13 = vector.load %arg5[%c0_12, %c0_13, %c0_14] : memref<1x10x128xf32, #tpu.memory_space<vmem>>, vector<1x10x128xf32>
    %14 = vector.shape_cast %3 : vector<10x128xf32> to vector<1x10x128xf32>
    %15 = arith.addf %13, %14 : vector<1x10x128xf32>
    %c0_15 = arith.constant 0 : index
    %c0_16 = arith.constant 0 : index
    %c0_17 = arith.constant 0 : index
    %16 = vector.load %arg5[%c0_15, %c0_16, %c0_17] : memref<1x10x128xf32, #tpu.memory_space<vmem>>, vector<1x10x128xf32>
    tpu.vector_store %arg5[%c0_15, %c0_16, %c0_17], %15 {strides = array<i32>} : memref<1x10x128xf32, #tpu.memory_space<vmem>>, vector<1x10x128xf32>,
    return
  }
  func.func @transform_0(%arg0: i32, %arg1: i32, %arg2: i32) -> (i32, i32, i32, i32) {
    %c0_i32 = arith.constant 0 : i32
    %c0_i32_0 = arith.constant 0 : i32
    return %arg1, %arg0, %arg2, %c0_i32 : i32, i32, i32, i32
  }
  func.func @transform_1(%arg0: i32, %arg1: i32, %arg2: i32) -> (i32, i32, i32) {
    %c0_i32 = arith.constant 0 : i32
    %c0_i32_0 = arith.constant 0 : i32
    %c0_i32_1 = arith.constant 0 : i32
    return %arg0, %c0_i32, %c0_i32_0 : i32, i32, i32
  }
  func.func @transform_2(%arg0: i32, %arg1: i32, %arg2: i32) -> (i32, i32, i32) {
    %c0_i32 = arith.constant 0 : i32
    %c0_i32_0 = arith.constant 0 : i32
    %c0_i32_1 = arith.constant 0 : i32
    return %arg0, %c0_i32, %c0_i32_0 : i32, i32, i32
  }
}

</mosaic_0001>

<llo_original>
// kernel: tpu_custom_call.1
$region0: #{tpu_custom_call.1}
  #allocation0 [shape = 'u32[]', space=smem, size = 0x4, offset = 0x4, fixed_abs, tag = 'smem constant byte address 0x4 - core index']
  #allocation1 [shape = 'u32[72,128]{1,0:T(1,128)}', space=vmem, size = 0x9000, scoped, tag = 'internal scratch']
  #allocation4 [shape = 's32[]', space=sflag, size = 0x4, offset = 0, fixed_abs, tag = 'sflag constant byte address 0x0 - dummy sync flag']
  %s0 = inlined_call_operand.hbm [shape: f32[2,20,32,128], index: 0, kind: input, shape index: {}]
  %s1 = inlined_call_operand.vmem [shape: f32[2,10,128], index: 1, kind: output, shape index: {0}]
  %s2 = inlined_call_operand.vmem [shape: f32[2,10,128], index: 2, kind: output, shape index: {1}]
  %3 = xla_tuple %s1, %s2
  %s4 = sld [smem:[#allocation0]]
  $region53: #{tpu_custom_call.1} parent=0
    _
  %s6 = ssub.s32 1, %s4
  %s7 = scalar_select 0, %s6, %s4
  $region1: #{tpu_custom_call.1} parent=0
    #allocation2 [shape = 'u8[655360]{0}', space=vmem, size = 0xa0000, scoped, tag = 'input window, operand 0']
    #allocation3 [shape = 's32[2]{0}', space=sflag, size = 0x8, scoped, tag = 'scoped memory for tpu_custom_call.1']
    %8 = vsyncpa [#allocation3], 0
    %s9 = scalar_lea.sflag [#allocation3], 1
    %10 = vsyncpa %s9, 0
    loop: start=0, step=1, limit=4
    $region2: #{tpu_custom_call.1} parent=1 // loop_pre_header
      _
    $region3: #{tpu_custom_call.1} parent=1 // loop_header
      %s12 = sphi 0, %s16
      %p13 = scmp.ge.s32.totalorder %s12, 4
      %s19 = sphi 0, %s38
      %s20 = sphi 0, %s34
      %s21 = sphi 0, %s30
      %s22 = sphi 0, %s19
      %s23 = sphi 0, %s20
      %s24 = sphi 0, %s21
      %s25 = sphi 0, %s22
      %s26 = sphi 0, %s23
      %s27 = sphi 0, %s24
      %s45 = sphi 0, %s47
      %s48 = sphi 0, %s45
      %s49 = sphi 0, %s48
      %s65 = sphi 0, %s49
      %s71 = sphi 0, %s73
      %s74 = sphi 0, %s71
      %s75 = sphi 0, %s74
      %s91 = sphi 0, %s75
      %s97 = sphi 0, %s99
      %s100 = sphi 0, %s97
      %s101 = sphi 0, %s100
      %s117 = sphi 0, %s101
    $region4: #{tpu_custom_call.1} parent=1 // loop_header_branch
      %15 = sbr.rel (%p13) target = $region8
    $region5: #{tpu_custom_call.1} parent=1 // loop_body
      %s17 = ssub.s32 %s12, 1
      %s18 = ssub.s32 %s12, 2
      %s28 = sadd.s32 1, %s21
      %p29 = scmp.ge.s32.totalorder %s28, 1
      %s30 = scalar_select %p29, 0, %s28
      %s31 = sadd.s32 1, %s20
      %s32 = scalar_select %p29, %s31, %s20
      %p33 = scmp.ge.s32.totalorder %s32, 1
      %s34 = scalar_select %p33, 0, %s32
      %s35 = sadd.s32 1, %s19
      %s36 = scalar_select %p33, %s35, %s19
      %p37 = scmp.ge.s32.totalorder %s36, 2
      %s38 = scalar_select %p37, 0, %s36
      %s39 = ssub.s32 %s20, %s34
      %s40 = ssub.s32 %s19, %s38
      %s41 = sor.u32 %s39, %s40
      %s42 = ssub.s32 %s21, %s30
      %s43 = sor.u32 %s41, %s42
      %p44 = scmp.eq.s32.totalorder %s43, 0
      %s46 = sadd.s32 %s45, 1
      %s47 = scalar_select %p44, %s45, %s46
      %p50 = pneg %p44
      %p51 = scmp.eq.s32.totalorder %s12, 1
      %p52 = por %p50, %p51
      %p53 = scmp.ne.s32.totalorder %s45, %s48
      %p54 = scmp.eq.s32.totalorder %s12, 0
      %p55 = por %p53, %p54
      %p56 = scmp.ne.s32.totalorder %s45, %s48
      %p57 = scmp.eq.s32.totalorder %s17, 1
      %p58 = por %p56, %p57
      %p59 = scmp.ne.s32.totalorder %s48, %s49
      %p60 = scmp.eq.s32.totalorder %s17, 0
      %p61 = por %p59, %p60
      %p62 = scmp.ne.s32.totalorder %s48, %s49
      %p63 = scmp.eq.s32.totalorder %s18, 1
      %p64 = por %p62, %p63
      %p66 = scmp.ne.s32.totalorder %s49, %s65
      %p67 = scmp.eq.s32.totalorder %s18, 0
      %p68 = por %p66, %p67
      %s69 = ssub.s32 %s19, %s38
      %p70 = scmp.eq.s32.totalorder %s69, 0
      %s72 = sadd.s32 %s71, 1
      %s73 = scalar_select %p70, %s71, %s72
      %p76 = pneg %p70
      %p77 = scmp.eq.s32.totalorder %s12, 1
      %p78 = por %p76, %p77
      %p79 = scmp.ne.s32.totalorder %s71, %s74
      %p80 = scmp.eq.s32.totalorder %s12, 0
      %p81 = por %p79, %p80
      %p82 = scmp.ne.s32.totalorder %s71, %s74
      %p83 = scmp.eq.s32.totalorder %s17, 1
      %p84 = por %p82, %p83
      %p85 = scmp.ne.s32.totalorder %s74, %s75
      %p86 = scmp.eq.s32.totalorder %s17, 0
      %p87 = por %p85, %p86
      %p88 = scmp.ne.s32.totalorder %s74, %s75
      %p89 = scmp.eq.s32.totalorder %s18, 1
      %p90 = por %p88, %p89
      %p92 = scmp.ne.s32.totalorder %s75, %s91
      %p93 = scmp.eq.s32.totalorder %s18, 0
      %p94 = por %p92, %p93
      %s95 = ssub.s32 %s19, %s38
      %p96 = scmp.eq.s32.totalorder %s95, 0
      %s98 = sadd.s32 %s97, 1
      %s99 = scalar_select %p96, %s97, %s98
      %p102 = pneg %p96
      %p103 = scmp.eq.s32.totalorder %s12, 1
      %p104 = por %p102, %p103
      %p105 = scmp.ne.s32.totalorder %s97, %s100
      %p106 = scmp.eq.s32.totalorder %s12, 0
      %p107 = por %p105, %p106
      %p108 = scmp.ne.s32.totalorder %s97, %s100
      %p109 = scmp.eq.s32.totalorder %s17, 1
      %p110 = por %p108, %p109
      %p111 = scmp.ne.s32.totalorder %s100, %s101
      %p112 = scmp.eq.s32.totalorder %s17, 0
      %p113 = por %p111, %p112
      %p114 = scmp.ne.s32.totalorder %s100, %s101
      %p115 = scmp.eq.s32.totalorder %s18, 1
      %p116 = por %p114, %p115
      %p118 = scmp.ne.s32.totalorder %s101, %s117
      %p119 = scmp.eq.s32.totalorder %s18, 0
      %p120 = por %p118, %p119
      %p121 = scmp.le.s32.totalorder 1, %s12
      %p122 = scmp.lt.s32.totalorder %s12, 3
      %p123 = pnand %p121, %p122
      %p124 = pneg %p123
      // Predicated region
      $region9: #{tpu_custom_call.1} parent=5 // pred_check
        _
      $region10: #{tpu_custom_call.1} parent=5 // pred_check_branch
        %126 = sbr.rel (%p123) target = $region12
      $region11: #{tpu_custom_call.1} parent=5 // pred_region
        %s127 = ssub.s32 %s12, 1
      $region12: #{tpu_custom_call.1} parent=5 // pred_fallthru
        _
      %p128 = scmp.lt.s32.totalorder %s12, 2
      // Predicated region
      $region13: #{tpu_custom_call.1} parent=5 // pred_check
        %p129 = pneg %p128
      $region14: #{tpu_custom_call.1} parent=5 // pred_check_branch
        %131 = sbr.rel (%p129) target = $region16
      $region15: #{tpu_custom_call.1} parent=5 // pred_region
        // Predicated region
        $region17: #{tpu_custom_call.1} parent=15 // pred_check
          %p132 = pneg %p55
        $region18: #{tpu_custom_call.1} parent=15 // pred_check_branch
          %134 = sbr.rel (%p132) target = $region20
        $region19: #{tpu_custom_call.1} parent=15 // pred_region
          #allocation5 [shape = 'u32[6]{0}', space=smem, size = 0x18, scoped, tag = 'DMA stride descriptor']
          %s135 = sand.u32 %s45, 1
          %s136 = scalar_lea.sflag [#allocation3], %s135
          %s137 = sand.u32 %s45, 1
          %s138 = smul.addr %s137, 640
          %s139 = scalar_lea.vmem [#allocation2], %s138
          %s140 = smul.u32 2, %s20
          %s141 = smul.u32 10, %s19
          %s142 = smul.u32 4, %s21
          %144 = vsyncadd %s136, 0
          %s145 = smul.addr %s141, 4
          %s146 = sadd.s32 %s142, %s145
          %s147 = smul.addr %s140, 80
          %s148 = sadd.s32 %s146, %s147
          %s149 = smul.addr %s148, 8
          %s150 = scalar_lea.hbm %s0, %s149
          %s152 = sshll.u32 1, 14
          %s153 = sxor.u32 4294967295, %s152
          %s155 = sld [smem:[#allocation0]]
          %s156 = sadd.s32 2, %s155
          %s158 = sshll.u32 7, 26
          %s159 = sxor.u32 4294967295, %s158
          %s160 = sand.u32 0, %s159
          %s161 = sshll.u32 %s156, 26
          %s162 = sor.u32 %s160, %s161
          %s163 = sshll.u32 %s150, 4
          %s164 = int_to_ptr.hbm [resolvable:$true] %s163
          %s165 = sshll.u32 %s139, 4
          %s166 = int_to_ptr.vmem [resolvable:$true] %s165
          %172 = sst [smem:[#allocation5]] 10240
          %s173 = scalar_lea.smem [#allocation5], 1
          %174 = sst [smem:[%s173]] 5120
          %s175 = scalar_lea.smem [#allocation5], 2
          %176 = sst [smem:[%s175]] 40
          %s177 = scalar_lea.smem [#allocation5], 3
          %178 = sst [smem:[%s177]] 128
          %s179 = scalar_lea.smem [#allocation5], 4
          %180 = sst [smem:[%s179]] 128
          %s181 = scalar_lea.smem [#allocation5], 5
          %182 = sst [smem:[%s181]] 8
          %184 = dma.general %s164, 10240, %s166, %s136, [#allocation4], [#allocation5], %s162, 0
        $region20: #{tpu_custom_call.1} parent=15 // pred_fallthru
          _
      $region16: #{tpu_custom_call.1} parent=5 // pred_fallthru
        _
      %p185 = scmp.le.s32.totalorder 1, %s12
      %p186 = scmp.lt.s32.totalorder %s12, 3
      %p187 = pnand %p185, %p186
      %p188 = pneg %p187
      // Predicated region
      $region21: #{tpu_custom_call.1} parent=5 // pred_check
        _
      $region22: #{tpu_custom_call.1} parent=5 // pred_check_branch
        %190 = sbr.rel (%p187) target = $region24
      $region23: #{tpu_custom_call.1} parent=5 // pred_region
        %s191 = ssub.s32 %s12, 1
        %s192 = sand.u32 %s48, 1
        %s193 = scalar_lea.sflag [#allocation3], %s192
        %s194 = sand.u32 %s48, 1
        %s195 = smul.addr %s194, 640
        %s196 = scalar_lea.vmem [#allocation2], %s195
        // Predicated region
        $region25: #{tpu_custom_call.1} parent=23 // pred_check
          %p197 = pneg %p61
        $region26: #{tpu_custom_call.1} parent=23 // pred_check_branch
          %199 = sbr.rel (%p197) target = $region28
        $region27: #{tpu_custom_call.1} parent=23 // pred_region
          %201 = dma.done %s193, 10240
        $region28: #{tpu_custom_call.1} parent=23 // pred_fallthru
          _
        %s202 = sand.u32 %s48, 1
        %s203 = scalar_lea.sflag [#allocation3], %s202
        %s204 = sand.u32 %s48, 1
        %s205 = smul.addr %s204, 640
        %s206 = scalar_lea.vmem [#allocation2], %s205
        %p207 = pneg %p61
        %p208 = pneg %p58
        %p209 = pneg %p87
        %p210 = pneg %p84
        %p211 = scmp.lt.s32.totalorder %s22, 1
        %s212 = scalar_select %p211, %s22, 1
        %s213 = smul.addr %s212, 2
        %s214 = smul.addr %s213, 8
        %s215 = scalar_lea.vmem %s1, %s214
        %p216 = pneg %p113
        %p217 = pneg %p110
        %p218 = scmp.lt.s32.totalorder %s22, 1
        %s219 = scalar_select %p218, %s22, 1
        %s220 = smul.addr %s219, 2
        %s221 = smul.addr %s220, 8
        %s222 = scalar_lea.vmem %s2, %s221
        %s223 = smul.u32 2, %s23
        %s224 = smul.u32 10, %s22
        %s225 = smul.u32 4, %s24
        %p226 = scmp.lt.s32.totalorder %s22, 1
        %s227 = scalar_select %p226, %s22, 1
        %s228 = smul.addr %s227, 2
        %s229 = smul.addr %s228, 8
        %s230 = scalar_lea.vmem %s1, %s229
        %p231 = scmp.lt.s32.totalorder %s22, 1
        %s232 = scalar_select %p231, %s22, 1
        %s233 = smul.addr %s232, 2
        %s234 = smul.addr %s233, 8
        %s235 = scalar_lea.vmem %s2, %s234
        %v236 = vld [vmem:[%s196] sm:$0xff]
        %v237 = vld [vmem:[%s196 + $0x8] sm:$0xff]
        %v238 = vld [vmem:[%s196 + $0x10] sm:$0xff]
        %v239 = vld [vmem:[%s196 + $0x18] sm:$0xff]
        %v240 = vld [vmem:[%s196 + $0x20] sm:$0xff]
        %v241 = vld [vmem:[%s196 + $0x28] sm:$0xff]
        %v242 = vld [vmem:[%s196 + $0x30] sm:$0xff]
        %v243 = vld [vmem:[%s196 + $0x38] sm:$0xff]
        %v244 = vld [vmem:[%s196 + $0x40] sm:$0xff]
        %v245 = vld [vmem:[%s196 + $0x48] sm:$0xff]
        %v246 = vld [vmem:[%s196 + $0x50] sm:$0xff]
        %v247 = vld [vmem:[%s196 + $0x58] sm:$0xff]
        %v248 = vld [vmem:[%s196 + $0x60] sm:$0xff]
        %v249 = vld [vmem:[%s196 + $0x68] sm:$0xff]
        %v250 = vld [vmem:[%s196 + $0x70] sm:$0xff]
        %v251 = vld [vmem:[%s196 + $0x78] sm:$0xff]
        %v252 = vld [vmem:[%s196 + $0x80] sm:$0xff]
        %v253 = vld [vmem:[%s196 + $0x88] sm:$0xff]
        %v254 = vld [vmem:[%s196 + $0x90] sm:$0xff]
        %v255 = vld [vmem:[%s196 + $0x98] sm:$0xff]
        %v256 = vld [vmem:[%s196 + $0xa0] sm:$0xff]
        %v257 = vld [vmem:[%s196 + $0xa8] sm:$0xff]
        %v258 = vld [vmem:[%s196 + $0xb0] sm:$0xff]
        %v259 = vld [vmem:[%s196 + $0xb8] sm:$0xff]
        %v260 = vld [vmem:[%s196 + $0xc0] sm:$0xff]
        %v261 = vld [vmem:[%s196 + $0xc8] sm:$0xff]
        %v262 = vld [vmem:[%s196 + $0xd0] sm:$0xff]
        %v263 = vld [vmem:[%s196 + $0xd8] sm:$0xff]
        %v264 = vld [vmem:[%s196 + $0xe0] sm:$0xff]
        %v265 = vld [vmem:[%s196 + $0xe8] sm:$0xff]
        %v266 = vld [vmem:[%s196 + $0xf0] sm:$0xff]
        %v267 = vld [vmem:[%s196 + $0xf8] sm:$0xff]
        %v268 = vld [vmem:[%s196 + $0x100] sm:$0xff]
        %v269 = vld [vmem:[%s196 + $0x108] sm:$0xff]
        %v270 = vld [vmem:[%s196 + $0x110] sm:$0xff]
        %v271 = vld [vmem:[%s196 + $0x118] sm:$0xff]
        %v272 = vld [vmem:[%s196 + $0x120] sm:$0xff]
        %v273 = vld [vmem:[%s196 + $0x128] sm:$0xff]
        %v274 = vld [vmem:[%s196 + $0x130] sm:$0xff]
        %v275 = vld [vmem:[%s196 + $0x138] sm:$0xff]
        %v276 = vld [vmem:[%s196 + $0x140] sm:$0xff]
        %v277 = vld [vmem:[%s196 + $0x148] sm:$0xff]
        %v278 = vld [vmem:[%s196 + $0x150] sm:$0xff]
        %v279 = vld [vmem:[%s196 + $0x158] sm:$0xff]
        %v280 = vld [vmem:[%s196 + $0x160] sm:$0xff]
        %v281 = vld [vmem:[%s196 + $0x168] sm:$0xff]
        %v282 = vld [vmem:[%s196 + $0x170] sm:$0xff]
        %v283 = vld [vmem:[%s196 + $0x178] sm:$0xff]
        %v284 = vld [vmem:[%s196 + $0x180] sm:$0xff]
        %v285 = vld [vmem:[%s196 + $0x188] sm:$0xff]
        %v286 = vld [vmem:[%s196 + $0x190] sm:$0xff]
        %v287 = vld [vmem:[%s196 + $0x198] sm:$0xff]
        %v288 = vld [vmem:[%s196 + $0x1a0] sm:$0xff]
        %v289 = vld [vmem:[%s196 + $0x1a8] sm:$0xff]
        %v290 = vld [vmem:[%s196 + $0x1b0] sm:$0xff]
        %v291 = vld [vmem:[%s196 + $0x1b8] sm:$0xff]
        %v292 = vld [vmem:[%s196 + $0x1c0] sm:$0xff]
        %v293 = vld [vmem:[%s196 + $0x1c8] sm:$0xff]
        %v294 = vld [vmem:[%s196 + $0x1d0] sm:$0xff]
        %v295 = vld [vmem:[%s196 + $0x1d8] sm:$0xff]
        %v296 = vld [vmem:[%s196 + $0x1e0] sm:$0xff]
        %v297 = vld [vmem:[%s196 + $0x1e8] sm:$0xff]
        %v298 = vld [vmem:[%s196 + $0x1f0] sm:$0xff]
        %v299 = vld [vmem:[%s196 + $0x1f8] sm:$0xff]
        %v300 = vld [vmem:[%s196 + $0x200] sm:$0xff]
        %v301 = vld [vmem:[%s196 + $0x208] sm:$0xff]
        %v302 = vld [vmem:[%s196 + $0x210] sm:$0xff]
        %v303 = vld [vmem:[%s196 + $0x218] sm:$0xff]
        %v304 = vld [vmem:[%s196 + $0x220] sm:$0xff]
        %v305 = vld [vmem:[%s196 + $0x228] sm:$0xff]
        %v306 = vld [vmem:[%s196 + $0x230] sm:$0xff]
        %v307 = vld [vmem:[%s196 + $0x238] sm:$0xff]
        %v308 = vld [vmem:[%s196 + $0x240] sm:$0xff]
        %v309 = vld [vmem:[%s196 + $0x248] sm:$0xff]
        %v310 = vld [vmem:[%s196 + $0x250] sm:$0xff]
        %v311 = vld [vmem:[%s196 + $0x258] sm:$0xff]
        %v312 = vld [vmem:[%s196 + $0x260] sm:$0xff]
        %v313 = vld [vmem:[%s196 + $0x268] sm:$0xff]
        %v314 = vld [vmem:[%s196 + $0x270] sm:$0xff]
        %v315 = vld [vmem:[%s196 + $0x278] sm:$0xff]
        %v316 = vadd.f32 %v236, %v237
        %v317 = vadd.f32 %v316, %v238
        %v318 = vadd.f32 %v317, %v239
        %v319 = vadd.f32 %v318, %v276
        %v320 = vadd.f32 %v319, %v277
        %v321 = vadd.f32 %v320, %v278
        %v322 = vadd.f32 %v321, %v279
        %v323 = vrot.slane %v322, 4
        %v324 = vadd.f32 %v322, %v323
        %v325 = vrot.slane %v324, 2
        %v326 = vadd.f32 %v324, %v325
        %v327 = vrot.slane %v326, 1
        %v328 = vadd.f32 %v326, %v327
        %v329 = vadd.f32 %v240, %v241
        %v330 = vadd.f32 %v329, %v242
        %v331 = vadd.f32 %v330, %v243
        %v332 = vadd.f32 %v331, %v280
        %v333 = vadd.f32 %v332, %v281
        %v334 = vadd.f32 %v333, %v282
        %v335 = vadd.f32 %v334, %v283
        %v336 = vrot.slane %v335, 4
        %v337 = vadd.f32 %v335, %v336
        %v338 = vrot.slane %v337, 2
        %v339 = vadd.f32 %v337, %v338
        %v340 = vrot.slane %v339, 1
        %v341 = vadd.f32 %v339, %v340
        %v342 = vadd.f32 %v244, %v245
        %v343 = vadd.f32 %v342, %v246
        %v344 = vadd.f32 %v343, %v247
        %v345 = vadd.f32 %v344, %v284
        %v346 = vadd.f32 %v345, %v285
        %v347 = vadd.f32 %v346, %v286
        %v348 = vadd.f32 %v347, %v287
        %v349 = vrot.slane %v348, 4
        %v350 = vadd.f32 %v348, %v349
        %v351 = vrot.slane %v350, 2
        %v352 = vadd.f32 %v350, %v351
        %v353 = vrot.slane %v352, 1
        %v354 = vadd.f32 %v352, %v353
        %v355 = vadd.f32 %v248, %v249
        %v356 = vadd.f32 %v355, %v250
        %v357 = vadd.f32 %v356, %v251
        %v358 = vadd.f32 %v357, %v288
        %v359 = vadd.f32 %v358, %v289
        %v360 = vadd.f32 %v359, %v290
        %v361 = vadd.f32 %v360, %v291
        %v362 = vrot.slane %v361, 4
        %v363 = vadd.f32 %v361, %v362
        %v364 = vrot.slane %v363, 2
        %v365 = vadd.f32 %v363, %v364
        %v366 = vrot.slane %v365, 1
        %v367 = vadd.f32 %v365, %v366
        %v368 = vadd.f32 %v252, %v253
        %v369 = vadd.f32 %v368, %v254
        %v370 = vadd.f32 %v369, %v255
        %v371 = vadd.f32 %v370, %v292
        %v372 = vadd.f32 %v371, %v293
        %v373 = vadd.f32 %v372, %v294
        %v374 = vadd.f32 %v373, %v295
        %v375 = vrot.slane %v374, 4
        %v376 = vadd.f32 %v374, %v375
        %v377 = vrot.slane %v376, 2
        %v378 = vadd.f32 %v376, %v377
        %v379 = vrot.slane %v378, 1
        %v380 = vadd.f32 %v378, %v379
        %v381 = vadd.f32 %v256, %v257
        %v382 = vadd.f32 %v381, %v258
        %v383 = vadd.f32 %v382, %v259
        %v384 = vadd.f32 %v383, %v296
        %v385 = vadd.f32 %v384, %v297
        %v386 = vadd.f32 %v385, %v298
        %v387 = vadd.f32 %v386, %v299
        %v388 = vrot.slane %v387, 4
        %v389 = vadd.f32 %v387, %v388
        %v390 = vrot.slane %v389, 2
        %v391 = vadd.f32 %v389, %v390
        %v392 = vrot.slane %v391, 1
        %v393 = vadd.f32 %v391, %v392
        %v394 = vadd.f32 %v260, %v261
        %v395 = vadd.f32 %v394, %v262
        %v396 = vadd.f32 %v395, %v263
        %v397 = vadd.f32 %v396, %v300
        %v398 = vadd.f32 %v397, %v301
        %v399 = vadd.f32 %v398, %v302
        %v400 = vadd.f32 %v399, %v303
        %v401 = vrot.slane %v400, 4
        %v402 = vadd.f32 %v400, %v401
        %v403 = vrot.slane %v402, 2
        %v404 = vadd.f32 %v402, %v403
        %v405 = vrot.slane %v404, 1
        %v406 = vadd.f32 %v404, %v405
        %v407 = vadd.f32 %v264, %v265
        %v408 = vadd.f32 %v407, %v266
        %v409 = vadd.f32 %v408, %v267
        %v410 = vadd.f32 %v409, %v304
        %v411 = vadd.f32 %v410, %v305
        %v412 = vadd.f32 %v411, %v306
        %v413 = vadd.f32 %v412, %v307
        %v414 = vrot.slane %v413, 4
        %v415 = vadd.f32 %v413, %v414
        %v416 = vrot.slane %v415, 2
        %v417 = vadd.f32 %v415, %v416
        %v418 = vrot.slane %v417, 1
        %v419 = vadd.f32 %v417, %v418
        %v420 = vadd.f32 %v268, %v269
        %v421 = vadd.f32 %v420, %v270
        %v422 = vadd.f32 %v421, %v271
        %v423 = vadd.f32 %v422, %v308
        %v424 = vadd.f32 %v423, %v309
        %v425 = vadd.f32 %v424, %v310
        %v426 = vadd.f32 %v425, %v311
        %v427 = vrot.slane %v426, 4
        %v428 = vadd.f32 %v426, %v427
        %v429 = vrot.slane %v428, 2
        %v430 = vadd.f32 %v428, %v429
        %v431 = vrot.slane %v430, 1
        %v432 = vadd.f32 %v430, %v431
        %v433 = vadd.f32 %v272, %v273
        %v434 = vadd.f32 %v433, %v274
        %v435 = vadd.f32 %v434, %v275
        %v436 = vadd.f32 %v435, %v312
        %v437 = vadd.f32 %v436, %v313
        %v438 = vadd.f32 %v437, %v314
        %v439 = vadd.f32 %v438, %v315
        %v440 = vrot.slane %v439, 4
        %v441 = vadd.f32 %v439, %v440
        %v442 = vrot.slane %v441, 2
        %v443 = vadd.f32 %v441, %v442
        %v444 = vrot.slane %v443, 1
        %v445 = vadd.f32 %v443, %v444
        %v446 = vmul.f32 %v236, %v236
        %v447 = vmul.f32 %v237, %v237
        %v448 = vmul.f32 %v238, %v238
        %v449 = vmul.f32 %v239, %v239
        %v450 = vmul.f32 %v240, %v240
        %v451 = vmul.f32 %v241, %v241
        %v452 = vmul.f32 %v242, %v242
        %v453 = vmul.f32 %v243, %v243
        %v454 = vmul.f32 %v244, %v244
        %v455 = vmul.f32 %v245, %v245
        %v456 = vmul.f32 %v246, %v246
        %v457 = vmul.f32 %v247, %v247
        %v458 = vmul.f32 %v248, %v248
        %v459 = vmul.f32 %v249, %v249
        %v460 = vmul.f32 %v250, %v250
        %v461 = vmul.f32 %v251, %v251
        %v462 = vmul.f32 %v252, %v252
        %v463 = vmul.f32 %v253, %v253
        %v464 = vmul.f32 %v254, %v254
        %v465 = vmul.f32 %v255, %v255
        %v466 = vmul.f32 %v256, %v256
        %v467 = vmul.f32 %v257, %v257
        %v468 = vmul.f32 %v258, %v258
        %v469 = vmul.f32 %v259, %v259
        %v470 = vmul.f32 %v260, %v260
        %v471 = vmul.f32 %v261, %v261
        %v472 = vmul.f32 %v262, %v262
        %v473 = vmul.f32 %v263, %v263
        %v474 = vmul.f32 %v264, %v264
        %v475 = vmul.f32 %v265, %v265
        %v476 = vmul.f32 %v266, %v266
        %v477 = vmul.f32 %v267, %v267
        %v478 = vmul.f32 %v268, %v268
        %v479 = vmul.f32 %v269, %v269
        %v480 = vmul.f32 %v270, %v270
        %v481 = vmul.f32 %v271, %v271
        %v482 = vmul.f32 %v272, %v272
        %v483 = vmul.f32 %v273, %v273
        %v484 = vmul.f32 %v274, %v274
        %v485 = vmul.f32 %v275, %v275
        %v486 = vmul.f32 %v276, %v276
        %v487 = vmul.f32 %v277, %v277
        %v488 = vmul.f32 %v278, %v278
        %v489 = vmul.f32 %v279, %v279
        %v490 = vmul.f32 %v280, %v280
        %v491 = vmul.f32 %v281, %v281
        %v492 = vmul.f32 %v282, %v282
        %v493 = vmul.f32 %v283, %v283
        %v494 = vmul.f32 %v284, %v284
        %v495 = vmul.f32 %v285, %v285
        %v496 = vmul.f32 %v286, %v286
        %v497 = vmul.f32 %v287, %v287
        %v498 = vmul.f32 %v288, %v288
        %v499 = vmul.f32 %v289, %v289
        %v500 = vmul.f32 %v290, %v290
        %v501 = vmul.f32 %v291, %v291
        %v502 = vmul.f32 %v292, %v292
        %v503 = vmul.f32 %v293, %v293
        %v504 = vmul.f32 %v294, %v294
        %v505 = vmul.f32 %v295, %v295
        %v506 = vmul.f32 %v296, %v296
        %v507 = vmul.f32 %v297, %v297
        %v508 = vmul.f32 %v298, %v298
        %v509 = vmul.f32 %v299, %v299
        %v510 = vmul.f32 %v300, %v300
        %v511 = vmul.f32 %v301, %v301
        %v512 = vmul.f32 %v302, %v302
        %v513 = vmul.f32 %v303, %v303
        %v514 = vmul.f32 %v304, %v304
        %v515 = vmul.f32 %v305, %v305
        %v516 = vmul.f32 %v306, %v306
        %v517 = vmul.f32 %v307, %v307
        %v518 = vmul.f32 %v308, %v308
        %v519 = vmul.f32 %v309, %v309
        %v520 = vmul.f32 %v310, %v310
        %v521 = vmul.f32 %v311, %v311
        %v522 = vmul.f32 %v312, %v312
        %v523 = vmul.f32 %v313, %v313
        %v524 = vmul.f32 %v314, %v314
        %v525 = vmul.f32 %v315, %v315
        %v526 = vadd.f32 %v446, %v447
        %v527 = vadd.f32 %v526, %v448
        %v528 = vadd.f32 %v527, %v449
        %v529 = vadd.f32 %v528, %v486
        %v530 = vadd.f32 %v529, %v487
        %v531 = vadd.f32 %v530, %v488
        %v532 = vadd.f32 %v531, %v489
        %v533 = vrot.slane %v532, 4
        %v534 = vadd.f32 %v532, %v533
        %v535 = vrot.slane %v534, 2
        %v536 = vadd.f32 %v534, %v535
        %v537 = vrot.slane %v536, 1
        %v538 = vadd.f32 %v536, %v537
        %v539 = vadd.f32 %v450, %v451
        %v540 = vadd.f32 %v539, %v452
        %v541 = vadd.f32 %v540, %v453
        %v542 = vadd.f32 %v541, %v490
        %v543 = vadd.f32 %v542, %v491
        %v544 = vadd.f32 %v543, %v492
        %v545 = vadd.f32 %v544, %v493
        %v546 = vrot.slane %v545, 4
        %v547 = vadd.f32 %v545, %v546
        %v548 = vrot.slane %v547, 2
        %v549 = vadd.f32 %v547, %v548
        %v550 = vrot.slane %v549, 1
        %v551 = vadd.f32 %v549, %v550
        %v552 = vadd.f32 %v454, %v455
        %v553 = vadd.f32 %v552, %v456
        %v554 = vadd.f32 %v553, %v457
        %v555 = vadd.f32 %v554, %v494
        %v556 = vadd.f32 %v555, %v495
        %v557 = vadd.f32 %v556, %v496
        %v558 = vadd.f32 %v557, %v497
        %v559 = vrot.slane %v558, 4
        %v560 = vadd.f32 %v558, %v559
        %v561 = vrot.slane %v560, 2
        %v562 = vadd.f32 %v560, %v561
        %v563 = vrot.slane %v562, 1
        %v564 = vadd.f32 %v562, %v563
        %v565 = vadd.f32 %v458, %v459
        %v566 = vadd.f32 %v565, %v460
        %v567 = vadd.f32 %v566, %v461
        %v568 = vadd.f32 %v567, %v498
        %v569 = vadd.f32 %v568, %v499
        %v570 = vadd.f32 %v569, %v500
        %v571 = vadd.f32 %v570, %v501
        %v572 = vrot.slane %v571, 4
        %v573 = vadd.f32 %v571, %v572
        %v574 = vrot.slane %v573, 2
        %v575 = vadd.f32 %v573, %v574
        %v576 = vrot.slane %v575, 1
        %v577 = vadd.f32 %v575, %v576
        %v578 = vadd.f32 %v462, %v463
        %v579 = vadd.f32 %v578, %v464
        %v580 = vadd.f32 %v579, %v465
        %v581 = vadd.f32 %v580, %v502
        %v582 = vadd.f32 %v581, %v503
        %v583 = vadd.f32 %v582, %v504
        %v584 = vadd.f32 %v583, %v505
        %v585 = vrot.slane %v584, 4
        %v586 = vadd.f32 %v584, %v585
        %v587 = vrot.slane %v586, 2
        %v588 = vadd.f32 %v586, %v587
        %v589 = vrot.slane %v588, 1
        %v590 = vadd.f32 %v588, %v589
        %v591 = vadd.f32 %v466, %v467
        %v592 = vadd.f32 %v591, %v468
        %v593 = vadd.f32 %v592, %v469
        %v594 = vadd.f32 %v593, %v506
        %v595 = vadd.f32 %v594, %v507
        %v596 = vadd.f32 %v595, %v508
        %v597 = vadd.f32 %v596, %v509
        %v598 = vrot.slane %v597, 4
        %v599 = vadd.f32 %v597, %v598
        %v600 = vrot.slane %v599, 2
        %v601 = vadd.f32 %v599, %v600
        %v602 = vrot.slane %v601, 1
        %v603 = vadd.f32 %v601, %v602
        %v604 = vadd.f32 %v470, %v471
        %v605 = vadd.f32 %v604, %v472
        %v606 = vadd.f32 %v605, %v473
        %v607 = vadd.f32 %v606, %v510
        %v608 = vadd.f32 %v607, %v511
        %v609 = vadd.f32 %v608, %v512
        %v610 = vadd.f32 %v609, %v513
        %v611 = vrot.slane %v610, 4
        %v612 = vadd.f32 %v610, %v611
        %v613 = vrot.slane %v612, 2
        %v614 = vadd.f32 %v612, %v613
        %v615 = vrot.slane %v614, 1
        %v616 = vadd.f32 %v614, %v615
        %v617 = vadd.f32 %v474, %v475
        %v618 = vadd.f32 %v617, %v476
        %v619 = vadd.f32 %v618, %v477
        %v620 = vadd.f32 %v619, %v514
        %v621 = vadd.f32 %v620, %v515
        %v622 = vadd.f32 %v621, %v516
        %v623 = vadd.f32 %v622, %v517
        %v624 = vrot.slane %v623, 4
        %v625 = vadd.f32 %v623, %v624
        %v626 = vrot.slane %v625, 2
        %v627 = vadd.f32 %v625, %v626
        %v628 = vrot.slane %v627, 1
        %v629 = vadd.f32 %v627, %v628
        %v630 = vadd.f32 %v478, %v479
        %v631 = vadd.f32 %v630, %v480
        %v632 = vadd.f32 %v631, %v481
        %v633 = vadd.f32 %v632, %v518
        %v634 = vadd.f32 %v633, %v519
        %v635 = vadd.f32 %v634, %v520
        %v636 = vadd.f32 %v635, %v521
        %v637 = vrot.slane %v636, 4
        %v638 = vadd.f32 %v636, %v637
        %v639 = vrot.slane %v638, 2
        %v640 = vadd.f32 %v638, %v639
        %v641 = vrot.slane %v640, 1
        %v642 = vadd.f32 %v640, %v641
        %v643 = vadd.f32 %v482, %v483
        %v644 = vadd.f32 %v643, %v484
        %v645 = vadd.f32 %v644, %v485
        %v646 = vadd.f32 %v645, %v522
        %v647 = vadd.f32 %v646, %v523
        %v648 = vadd.f32 %v647, %v524
        %v649 = vadd.f32 %v648, %v525
        %v650 = vrot.slane %v649, 4
        %v651 = vadd.f32 %v649, %v650
        %v652 = vrot.slane %v651, 2
        %v653 = vadd.f32 %v651, %v652
        %v654 = vrot.slane %v653, 1
        %v655 = vadd.f32 %v653, %v654
        %p656 = scmp.eq.s32.totalorder %s23, 0
        %p657 = scmp.eq.s32.totalorder %s24, 0
        %p658 = pnand %p656, %p657
        %p659 = pneg %p658
        // Predicated region
        $region29: #{tpu_custom_call.1} parent=23 // pred_check
          _
        $region30: #{tpu_custom_call.1} parent=23 // pred_check_branch
          %661 = sbr.rel (%p658) target = $region32
        $region31: #{tpu_custom_call.1} parent=23 // pred_region
          %662 = vst [vmem:[%s230] sm:$0xff] 0.0
          %663 = vst [vmem:[%s230 + $0x8] sm:$0x3] 0.0
          %664 = vst [vmem:[%s235] sm:$0xff] 0.0
          %665 = vst [vmem:[%s235 + $0x8] sm:$0x3] 0.0
        $region32: #{tpu_custom_call.1} parent=23 // pred_fallthru
          _
        %v666 = vld [vmem:[%s230] sm:$0xff]
        %v667 = vld [vmem:[%s230 + $0x8] sm:$0x3]
        %vm678 = vcmask 1041409
        %v679 = vsel %vm678, %v341, %v328
        %vm680 = vcmask 1042434
        %v681 = vsel %vm680, %v354, %v679
        %vm682 = vcmask 1043459
        %v683 = vsel %vm682, %v367, %v681
        %vm684 = vcmask 1044484
        %v685 = vsel %vm684, %v380, %v683
        %vm686 = vcmask 1045509
        %v687 = vsel %vm686, %v393, %v685
        %vm688 = vcmask 1046534
        %v689 = vsel %vm688, %v406, %v687
        %vm690 = vcmask 1047559
        %v691 = vsel %vm690, %v419, %v689
        %v692 = vsel %vm678, %v445, %v432
        %v695 = vadd.f32 %v666, %v691
        %v696 = vadd.f32 %v667, %v692
        %697 = vst [vmem:[%s230] sm:$0xff] %v695
        %698 = vst [vmem:[%s230 + $0x8] sm:$0x3] %v696
        %v699 = vld [vmem:[%s235] sm:$0xff]
        %v700 = vld [vmem:[%s235 + $0x8] sm:$0x3]
        %v711 = vsel %vm678, %v551, %v538
        %v712 = vsel %vm680, %v564, %v711
        %v713 = vsel %vm682, %v577, %v712
        %v714 = vsel %vm684, %v590, %v713
        %v715 = vsel %vm686, %v603, %v714
        %v716 = vsel %vm688, %v616, %v715
        %v717 = vsel %vm690, %v629, %v716
        %v718 = vsel %vm678, %v655, %v642
        %v721 = vadd.f32 %v699, %v717
        %v722 = vadd.f32 %v700, %v718
        %723 = vst [vmem:[%s235] sm:$0xff] %v721
        %724 = vst [vmem:[%s235 + $0x8] sm:$0x3] %v722
        %p725 = scmp.lt.s32.totalorder %s22, 1
        %s726 = scalar_select %p725, %s22, 1
        %s727 = smul.addr %s726, 2
        %s728 = smul.addr %s727, 8
        %s729 = scalar_lea.vmem %s1, %s728
        %p730 = scmp.lt.s32.totalorder %s22, 1
        %s731 = scalar_select %p730, %s22, 1
        %s732 = smul.addr %s731, 2
        %s733 = smul.addr %s732, 8
        %s734 = scalar_lea.vmem %s2, %s733
        // Predicated region
        $region33: #{tpu_custom_call.1} parent=23 // pred_check
          %p735 = pneg %p84
        $region34: #{tpu_custom_call.1} parent=23 // pred_check_branch
          %737 = sbr.rel (%p735) target = $region36
        $region35: #{tpu_custom_call.1} parent=23 // pred_region
          _
        $region36: #{tpu_custom_call.1} parent=23 // pred_fallthru
          _
        // Predicated region
        $region37: #{tpu_custom_call.1} parent=23 // pred_check
          %p738 = pneg %p110
        $region38: #{tpu_custom_call.1} parent=23 // pred_check_branch
          %740 = sbr.rel (%p738) target = $region40
        $region39: #{tpu_custom_call.1} parent=23 // pred_region
          _
        $region40: #{tpu_custom_call.1} parent=23 // pred_fallthru
          _
      $region24: #{tpu_custom_call.1} parent=5 // pred_fallthru
        _
      %p741 = scmp.le.s32.totalorder 2, %s12
      // Predicated region
      $region41: #{tpu_custom_call.1} parent=5 // pred_check
        %p742 = pneg %p741
      $region42: #{tpu_custom_call.1} parent=5 // pred_check_branch
        %744 = sbr.rel (%p742) target = $region44
      $region43: #{tpu_custom_call.1} parent=5 // pred_region
        %s745 = ssub.s32 %s12, 2
        // Predicated region
        $region45: #{tpu_custom_call.1} parent=43 // pred_check
          %p746 = pneg %p90
        $region46: #{tpu_custom_call.1} parent=43 // pred_check_branch
          %748 = sbr.rel (%p746) target = $region48
        $region47: #{tpu_custom_call.1} parent=43 // pred_region
          %p749 = scmp.lt.s32.totalorder %s25, 1
          %s750 = scalar_select %p749, %s25, 1
          %s751 = smul.addr %s750, 2
          %s752 = smul.addr %s751, 8
          %s753 = scalar_lea.vmem %s1, %s752
        $region48: #{tpu_custom_call.1} parent=43 // pred_fallthru
          _
        // Predicated region
        $region49: #{tpu_custom_call.1} parent=43 // pred_check
          %p754 = pneg %p116
        $region50: #{tpu_custom_call.1} parent=43 // pred_check_branch
          %756 = sbr.rel (%p754) target = $region52
        $region51: #{tpu_custom_call.1} parent=43 // pred_region
          %p757 = scmp.lt.s32.totalorder %s25, 1
          %s758 = scalar_select %p757, %s25, 1
          %s759 = smul.addr %s758, 2
          %s760 = smul.addr %s759, 8
          %s761 = scalar_lea.vmem %s2, %s760
        $region52: #{tpu_custom_call.1} parent=43 // pred_fallthru
          _
      $region44: #{tpu_custom_call.1} parent=5 // pred_fallthru
        _
    $region6: #{tpu_custom_call.1} parent=1 // loop_footer
      %s16 = sadd.s32 1, %s12
    $region7: #{tpu_custom_call.1} parent=1 // loop_footer_branch
      %11 = sbr.rel target = $region3
    $region8: #{tpu_custom_call.1} parent=1 // loop_exit
      _
    %762 = vsyncpa [#allocation3], 1
    %s763 = scalar_lea.sflag [#allocation3], 1
    %764 = vsyncpa %s763, 1

</llo_original>
